<compile_context>
chip_gen: v7x
topology: tpu7x:2x2x1
jax: 0.10.0
libtpu: 0.0.40
codegen_flags: <defaults>
</compile_context>

<pallas_src>
import functools

import jax
import jax.numpy as jnp
from jax import lax
from jax.experimental import pallas as pl
from jax.experimental.pallas import tpu as pltpu

LN_EPS = 1e-5


# ----------------------------------------------------------------------------
# Kernel 1: LayerNorm (over feature dim) + causal depthwise Conv1d
# ----------------------------------------------------------------------------
def _ln_conv_kernel(K, x_ref, g_ref, b_ref, w_ref, cb_ref, out_ref, xpad_scr):
    Bb, L, D = x_ref.shape
    x = x_ref[...].astype(jnp.float32)
    mean = jnp.mean(x, axis=-1, keepdims=True)
    var = jnp.mean((x - mean) ** 2, axis=-1, keepdims=True)
    xn = (x - mean) * lax.rsqrt(var + LN_EPS)
    xn = xn * g_ref[...][None] + b_ref[...][None]           # (1,1,D) broadcast

    # Causal zero padding lives in a VMEM scratch (no extra HBM pad array).
    xpad_scr[...] = jnp.zeros_like(xpad_scr)
    xpad_scr[:, K - 1:, :] = xn

    w = w_ref[...]                                          # (K, D) depthwise taps
    acc = jnp.zeros((Bb, L, D), jnp.float32)
    for k in range(K):                                      # static unrolled taps
        acc = acc + xpad_scr[:, k:k + L, :] * w[k:k + 1][None]
    acc = acc + cb_ref[...][None]
    out_ref[...] = acc.astype(out_ref.dtype)


def layernorm_causal_depthwise_conv(x, gamma, beta, conv_w, conv_b, d_conv,
                                    b_block=1):
    B, L, D = x.shape
    K = d_conv
    assert B % b_block == 0
    kernel = functools.partial(_ln_conv_kernel, K)
    return pl.pallas_call(
        kernel,
        out_shape=jax.ShapeDtypeStruct((B, L, D), jnp.float32),
        grid_spec=pltpu.PrefetchScalarGridSpec(
            num_scalar_prefetch=0,
            grid=(B // b_block,),
            in_specs=[
                pl.BlockSpec((b_block, L, D), lambda b: (b, 0, 0)),
                pl.BlockSpec((1, D), lambda b: (0, 0)),
                pl.BlockSpec((1, D), lambda b: (0, 0)),
                pl.BlockSpec((K, D), lambda b: (0, 0)),
                pl.BlockSpec((1, D), lambda b: (0, 0)),
            ],
            out_specs=pl.BlockSpec((b_block, L, D), lambda b: (b, 0, 0)),
            scratch_shapes=[pltpu.VMEM((b_block, L + K - 1, D), jnp.float32)],
        ),
        compiler_params=pltpu.CompilerParams(
            dimension_semantics=("parallel",)),
    )(x, gamma, beta, conv_w, conv_b)


# ----------------------------------------------------------------------------
# Kernel 2: fused stack of RNNBatchEnsembleLayers (time-blocked recurrence)
# ----------------------------------------------------------------------------
def _fused_rnn_kernel(NL, T, EH, *refs):
    # refs = [x, wp0, wih_bd[1..NL-1], whh_bd[0..NL-1], s[0..NL-1],
    #         y, hlast, h_scr, io_scr]
    n_in = 1 + 1 + (NL - 1) + NL + NL
    x_ref = refs[0]
    wp0_ref = refs[1]
    wih_refs = refs[2:1 + NL]               # layers 1..NL-1 (block-diag, r folded)
    whh_refs = refs[1 + NL:1 + 2 * NL]      # layers 0..NL-1 (block-diag)
    s_refs = refs[1 + 2 * NL:1 + 3 * NL]    # layers 0..NL-1, flattened to (1, E*H)
    y_ref, hlast_ref = refs[n_in], refs[n_in + 1]
    h_scr, io_scr = refs[n_in + 2], refs[n_in + 3]

    tb = pl.program_id(1)                   # time-block index ("arbitrary" axis)

    @pl.when(tb == 0)
    def _():                                # fresh hidden state per batch block
        h_scr[...] = jnp.zeros_like(h_scr)

    Bb, _, D = x_ref.shape

    for l in range(NL):
        # ---- hoisted input projection for the whole time block: ONE wide GEMM
        if l == 0:
            inp = x_ref[...].astype(jnp.float32).reshape(Bb * T, D)
            w_in = wp0_ref[...]             # (D, E*H): r0 folded in, E expanded here
        else:
            inp = io_scr[...].reshape(Bb * T, EH)
            w_in = wih_refs[l - 1][...]     # (E*H, E*H) block-diagonal
        proj = jnp.dot(inp, w_in,
                       preferred_element_type=jnp.float32).reshape(Bb, T, EH)

        whh = whh_refs[l][...]              # (E*H, E*H) block-diagonal W_hh
        s_l = s_refs[l][...]                # (1, E*H) output scaling
        dest = y_ref if l == NL - 1 else io_scr

        # ---- serial recurrence over the T timesteps of this block (unrolled)
        h = h_scr[l]                        # (Bb, E*H)
        for t in range(T):
            rec = jnp.dot(h, whh, preferred_element_type=jnp.float32)
            h = jnp.tanh(proj[:, t, :] + rec)
            dest[:, t:t + 1, :] = (h * s_l)[:, None, :]     # lane-dense store
        h_scr[l] = h

    @pl.when(tb == pl.num_programs(1) - 1)  # write last hidden only once
    def _():
        hlast_ref[...] = h_scr[NL - 1][:, None, :]


def fused_rnn_stack(xc, wp0, wih_bds, whh_bds, s_flats, EH,
                    t_block=8, b_block=None):
    B, L, D = xc.shape
    NL = len(whh_bds)
    b_block = B if b_block is None else b_block
    T = min(t_block, L)
    assert L % T == 0 and (T % 8 == 0 or T == L), "time block must tile L (sublane-aligned)"
    assert B % b_block == 0
    grid = (B // b_block, L // T)

    weights = [wp0] + list(wih_bds) + list(whh_bds) + list(s_flats)   # all 2-D
    in_specs = [pl.BlockSpec((b_block, T, D), lambda b, t: (b, t, 0))]
    in_specs += [pl.BlockSpec(w.shape, lambda b, t: (0, 0)) for w in weights]

    kernel = functools.partial(_fused_rnn_kernel, NL, T, EH)
    y, hlast = pl.pallas_call(
        kernel,
        out_shape=(jax.ShapeDtypeStruct((B, L, EH), jnp.float32),
                   jax.ShapeDtypeStruct((B, 1, EH), jnp.float32)),
        grid_spec=pltpu.PrefetchScalarGridSpec(
            num_scalar_prefetch=0,
            grid=grid,
            in_specs=in_specs,
            out_specs=(pl.BlockSpec((b_block, T, EH), lambda b, t: (b, t, 0)),
                       pl.BlockSpec((b_block, 1, EH), lambda b, t: (b, 0, 0))),
            scratch_shapes=[pltpu.VMEM((NL, b_block, EH), jnp.float32),   # h per layer
                            pltpu.VMEM((b_block, T, EH), jnp.float32)],  # inter-layer block
        ),
        compiler_params=pltpu.CompilerParams(
            dimension_semantics=("parallel", "arbitrary")),   # time carries state
    )(xc, *weights)
    return y, hlast


# ----------------------------------------------------------------------------
# Weight folding (tiny, one-time, weight-only -- not activation pre-scaling)
# ----------------------------------------------------------------------------
def _block_diag(blocks):
    """blocks: (E, G, H) -> (E*G, E*H) block-diagonal; ensemble members never mix."""
    E, G, H = blocks.shape
    eye = jnp.eye(E, dtype=blocks.dtype)
    return (eye[:, None, :, None] * blocks[:, :, None, :]).reshape(E * G, E * H)


# ----------------------------------------------------------------------------
# Parameter init (deterministic, mirrors module __init__ shapes/defaults)
# ----------------------------------------------------------------------------
def init_params(key, D, H, E, n_layers, d_conv):
    keys = jax.random.split(key, 2 + n_layers)
    params = {
        "ln_gamma": jnp.ones((1, D), jnp.float32),
        "ln_beta": jnp.zeros((1, D), jnp.float32),
        # PyTorch Conv1d weight is (D, 1, K); stored here as (K, D).
        "conv_w": 0.1 * jax.random.normal(keys[0], (d_conv, D), jnp.float32),
        "conv_b": 0.1 * jax.random.normal(keys[1], (1, D), jnp.float32),
        "layers": [],
    }
    for i in range(n_layers):
        din = D if i == 0 else H
        k0, k1, k2, k3 = jax.random.split(keys[2 + i], 4)
        layer = {
            # W_ih: (H, din), W_hh: (H, H) in torch; stored transposed for x @ W^T.
            "wih_t": 0.1 * jax.random.normal(k0, (din, H), jnp.float32),
            "whh_t": 0.1 * jax.random.normal(k1, (H, H), jnp.float32),
        }
        if i == 0:   # first layer: scaling_init='normal'
            layer["r"] = jax.random.normal(k2, (E, din), jnp.float32)
            layer["s"] = jax.random.normal(k3, (E, H), jnp.float32)
        else:        # other layers: scaling_init='ones' (config default)
            layer["r"] = jnp.ones((E, din), jnp.float32)
            layer["s"] = jnp.ones((E, H), jnp.float32)
        params["layers"].append(layer)          # ensemble_bias=False default
    return params


# ----------------------------------------------------------------------------
# Full forward (Pallas)
# ----------------------------------------------------------------------------
def ensemble_conv_rnn_forward(x, params, E, d_conv, t_block=8):
    B, L, D = x.shape
    xc = layernorm_causal_depthwise_conv(
        x, params["ln_gamma"], params["ln_beta"],
        params["conv_w"], params["conv_b"], d_conv)

    layers = params["layers"]
    NL = len(layers)
    H = layers[0]["wih_t"].shape[1]
    EH = E * H

    # Fold ensemble input-scaling r into W_ih (layer 0 -> dense (D, E*H) so the
    # ensemble expansion never materializes in HBM); later layers and all W_hh
    # become block-diagonal (E*H, E*H) so the kernel stays lane-dense.
    r0, wih0 = layers[0]["r"], layers[0]["wih_t"]
    wp0 = (r0.T[:, :, None] * wih0[:, None, :]).reshape(D, EH)
    wih_bds = [_block_diag(layers[l]["r"][:, :, None] * layers[l]["wih_t"][None])
               for l in range(1, NL)]
    whh_bds = [_block_diag(jnp.broadcast_to(layers[l]["whh_t"][None], (E, H, H)))
               for l in range(NL)]
    s_flats = [layers[l]["s"].reshape(1, EH) for l in range(NL)]

    y, hlast = fused_rnn_stack(xc, wp0, wih_bds, whh_bds, s_flats, EH,
                               t_block=t_block)
    return y.reshape(B, L, E, H), hlast.reshape(B, E, H)


# ----------------------------------------------------------------------------
# Pure-JAX reference (for correctness check)
# ----------------------------------------------------------------------------
def ref_forward(x, params, E, d_conv):
    B, L, D = x.shape
    mean = x.mean(-1, keepdims=True)
    var = ((x - mean) ** 2).mean(-1, keepdims=True)
    xn = (x - mean) * lax.rsqrt(var + LN_EPS)
    xn = xn * params["ln_gamma"][0] + params["ln_beta"][0]
    xp = jnp.pad(xn, ((0, 0), (d_conv - 1, 0), (0, 0)))
    y = sum(xp[:, k:k + L, :] * params["conv_w"][k] for k in range(d_conv))
    y = y + params["conv_b"][0]
    cur = jnp.broadcast_to(y[:, :, None, :], (B, L, E, D))
    h = None
    for lyr in params["layers"]:
        H = lyr["wih_t"].shape[1]
        h = jnp.zeros((B, E, H), jnp.float32)
        outs = []
        for t in range(L):
            x_t = cur[:, t] * lyr["r"][None]
            h = jnp.tanh(
                jnp.einsum("bed,dh->beh", x_t, lyr["wih_t"],
                           preferred_element_type=jnp.float32)
                + jnp.einsum("beh,hg->beg", h, lyr["whh_t"],
                             preferred_element_type=jnp.float32))
            outs.append(h * lyr["s"][None])
        cur = jnp.stack(outs, axis=1)
    return cur, h


if __name__ == "__main__":
    B, L, D, H, E, N_LAYERS, D_CONV = 2, 16, 32, 32, 4, 3, 4   # E*H = 128 (lane-dense)
    key = jax.random.PRNGKey(0)
    kx, kp = jax.random.split(key)
    x = jax.random.normal(kx, (B, L, D), jnp.float32)
    params = init_params(kp, D, H, E, N_LAYERS, D_CONV)

    out, h_last = ensemble_conv_rnn_forward(x, params, E, D_CONV, t_block=8)
    out = jax.block_until_ready(out)
    h_last = jax.block_until_ready(h_last)

    ref_out, ref_h = ref_forward(x, params, E, D_CONV)
    assert out.shape == (B, L, E, H) and h_last.shape == (B, E, H)
    assert jnp.allclose(out, ref_out, rtol=5e-2, atol=5e-2)
    assert jnp.allclose(h_last, ref_h, rtol=5e-2, atol=5e-2)
    print("KERNEL_OK")
</pallas_src>

<mosaic_0001>
module attributes {stable_mosaic.version = 11 : i64} {
  func.func @_ln_conv_kernel(%arg0: i32, %arg1: memref<1x16x32xf32, #tpu.memory_space<vmem>>, %arg2: memref<1x32xf32, #tpu.memory_space<vmem>>, %arg3: memref<1x32xf32, #tpu.memory_space<vmem>>, %arg4: memref<4x32xf32, #tpu.memory_space<vmem>>, %arg5: memref<1x32xf32, #tpu.memory_space<vmem>>, %arg6: memref<1x16x32xf32, #tpu.memory_space<vmem>>, %arg7: memref<1x19x32xf32, #tpu.memory_space<vmem>>) attributes {dimension_semantics = [#tpu.dimension_semantics<parallel>], iteration_bounds = array<i64: 2>, scalar_prefetch = 0 : i64, scratch_operands = 1 : i64, tpu.core_type = #tpu.core_type<tc>, window_params = [{transform_indices = @transform_0, window_bounds = array<i64: 1, 16, 32>}, {pipeline_mode = #tpu.pipeline_mode<synchronous>, transform_indices = @transform_1, window_bounds = array<i64: 1, 32>}, {pipeline_mode = #tpu.pipeline_mode<synchronous>, transform_indices = @transform_2, window_bounds = array<i64: 1, 32>}, {pipeline_mode = #tpu.pipeline_mode<synchronous>, transform_indices = @transform_3, window_bounds = array<i64: 4, 32>}, {pipeline_mode = #tpu.pipeline_mode<synchronous>, transform_indices = @transform_4, window_bounds = array<i64: 1, 32>}, {transform_indices = @transform_5, window_bounds = array<i64: 1, 16, 32>}]} {
    %c0 = arith.constant 0 : index
    %c0_0 = arith.constant 0 : index
    %c0_1 = arith.constant 0 : index
    %0 = vector.load %arg1[%c0, %c0_0, %c0_1] : memref<1x16x32xf32, #tpu.memory_space<vmem>>, vector<1x16x32xf32>
    %cst = arith.constant dense<0.000000e+00> : vector<1x16xf32>
    %1 = vector.multi_reduction <add>, %0, %cst [2] : vector<1x16x32xf32> to vector<1x16xf32>
    %2 = vector.shape_cast %1 : vector<1x16xf32> to vector<1x16x1xf32>
    %cst_2 = arith.constant 3.200000e+01 : f32
    %3 = vector.broadcast %cst_2 : f32 to vector<1x16x1xf32>
    %4 = arith.divf %2, %3 : vector<1x16x1xf32>
    %5 = vector.broadcast %4 : vector<1x16x1xf32> to vector<1x16x32xf32>
    %6 = arith.subf %0, %5 : vector<1x16x32xf32>
    %7 = arith.mulf %6, %6 : vector<1x16x32xf32>
    %cst_3 = arith.constant dense<0.000000e+00> : vector<1x16xf32>
    %8 = vector.multi_reduction <add>, %7, %cst_3 [2] : vector<1x16x32xf32> to vector<1x16xf32>
    %9 = vector.shape_cast %8 : vector<1x16xf32> to vector<1x16x1xf32>
    %cst_4 = arith.constant 3.200000e+01 : f32
    %10 = vector.broadcast %cst_4 : f32 to vector<1x16x1xf32>
    %11 = arith.divf %9, %10 : vector<1x16x1xf32>
    %12 = vector.broadcast %4 : vector<1x16x1xf32> to vector<1x16x32xf32>
    %13 = arith.subf %0, %12 : vector<1x16x32xf32>
    %cst_5 = arith.constant 9.99999974E-6 : f32
    %14 = vector.broadcast %cst_5 : f32 to vector<1x16x1xf32>
    %15 = arith.addf %11, %14 : vector<1x16x1xf32>
    %16 = math.rsqrt %15 : vector<1x16x1xf32>
    %17 = vector.broadcast %16 : vector<1x16x1xf32> to vector<1x16x32xf32>
    %18 = arith.mulf %13, %17 : vector<1x16x32xf32>
    %c0_6 = arith.constant 0 : index
    %c0_7 = arith.constant 0 : index
    %19 = vector.load %arg2[%c0_6, %c0_7] : memref<1x32xf32, #tpu.memory_space<vmem>>, vector<1x32xf32>
    %20 = vector.shape_cast %19 : vector<1x32xf32> to vector<1x1x32xf32>
    %21 = vector.broadcast %20 : vector<1x1x32xf32> to vector<1x16x32xf32>
    %22 = arith.mulf %18, %21 : vector<1x16x32xf32>
    %c0_8 = arith.constant 0 : index
    %c0_9 = arith.constant 0 : index
    %23 = vector.load %arg3[%c0_8, %c0_9] : memref<1x32xf32, #tpu.memory_space<vmem>>, vector<1x32xf32>
    %24 = vector.shape_cast %23 : vector<1x32xf32> to vector<1x1x32xf32>
    %25 = vector.broadcast %24 : vector<1x1x32xf32> to vector<1x16x32xf32>
    %26 = arith.addf %22, %25 : vector<1x16x32xf32>
    %cst_10 = arith.constant 0.000000e+00 : f32
    %27 = vector.broadcast %cst_10 : f32 to vector<1x19x32xf32>
    %c0_11 = arith.constant 0 : index
    %c0_12 = arith.constant 0 : index
    %c0_13 = arith.constant 0 : index
    %28 = vector.load %arg7[%c0_11, %c0_12, %c0_13] : memref<1x19x32xf32, #tpu.memory_space<vmem>>, vector<1x19x32xf32>
    tpu.vector_store %arg7[%c0_11, %c0_12, %c0_13], %27 {strides = array<i32>} : memref<1x19x32xf32, #tpu.memory_space<vmem>>, vector<1x19x32xf32>,
    %c0_14 = arith.constant 0 : index
    %c3 = arith.constant 3 : index
    %c0_15 = arith.constant 0 : index
    %29 = vector.load %arg7[%c0_14, %c3, %c0_15] : memref<1x19x32xf32, #tpu.memory_space<vmem>>, vector<1x16x32xf32>
    tpu.vector_store %arg7[%c0_14, %c3, %c0_15], %26 {strides = array<i32>} : memref<1x19x32xf32, #tpu.memory_space<vmem>>, vector<1x16x32xf32>,
    %c0_16 = arith.constant 0 : index
    %c0_17 = arith.constant 0 : index
    %30 = vector.load %arg4[%c0_16, %c0_17] : memref<4x32xf32, #tpu.memory_space<vmem>>, vector<4x32xf32>
    %cst_18 = arith.constant 0.000000e+00 : f32
    %31 = vector.broadcast %cst_18 : f32 to vector<1x16x32xf32>
    %c0_19 = arith.constant 0 : index
    %c0_20 = arith.constant 0 : index
    %c0_21 = arith.constant 0 : index
    %32 = vector.load %arg7[%c0_19, %c0_20, %c0_21] : memref<1x19x32xf32, #tpu.memory_space<vmem>>, vector<1x16x32xf32>
    %33 = vector.extract_strided_slice %30 {offsets = [0, 0], sizes = [1, 32], strides = [1, 1]} : vector<4x32xf32> to vector<1x32xf32>
    %34 = vector.shape_cast %33 : vector<1x32xf32> to vector<1x1x32xf32>
    %35 = vector.broadcast %34 : vector<1x1x32xf32> to vector<1x16x32xf32>
    %36 = arith.mulf %32, %35 : vector<1x16x32xf32>
    %37 = arith.addf %31, %36 : vector<1x16x32xf32>
    %c0_22 = arith.constant 0 : index
    %c1 = arith.constant 1 : index
    %c0_23 = arith.constant 0 : index
    %38 = vector.load %arg7[%c0_22, %c1, %c0_23] : memref<1x19x32xf32, #tpu.memory_space<vmem>>, vector<1x16x32xf32>
    %39 = vector.extract_strided_slice %30 {offsets = [1, 0], sizes = [1, 32], strides = [1, 1]} : vector<4x32xf32> to vector<1x32xf32>
    %40 = vector.shape_cast %39 : vector<1x32xf32> to vector<1x1x32xf32>
    %41 = vector.broadcast %40 : vector<1x1x32xf32> to vector<1x16x32xf32>
    %42 = arith.mulf %38, %41 : vector<1x16x32xf32>
    %43 = arith.addf %37, %42 : vector<1x16x32xf32>
    %c0_24 = arith.constant 0 : index
    %c2 = arith.constant 2 : index
    %c0_25 = arith.constant 0 : index
    %44 = vector.load %arg7[%c0_24, %c2, %c0_25] : memref<1x19x32xf32, #tpu.memory_space<vmem>>, vector<1x16x32xf32>
    %45 = vector.extract_strided_slice %30 {offsets = [2, 0], sizes = [1, 32], strides = [1, 1]} : vector<4x32xf32> to vector<1x32xf32>
    %46 = vector.shape_cast %45 : vector<1x32xf32> to vector<1x1x32xf32>
    %47 = vector.broadcast %46 : vector<1x1x32xf32> to vector<1x16x32xf32>
    %48 = arith.mulf %44, %47 : vector<1x16x32xf32>
    %49 = arith.addf %43, %48 : vector<1x16x32xf32>
    %c0_26 = arith.constant 0 : index
    %c3_27 = arith.constant 3 : index
    %c0_28 = arith.constant 0 : index
    %50 = vector.load %arg7[%c0_26, %c3_27, %c0_28] : memref<1x19x32xf32, #tpu.memory_space<vmem>>, vector<1x16x32xf32>
    %51 = vector.extract_strided_slice %30 {offsets = [3, 0], sizes = [1, 32], strides = [1, 1]} : vector<4x32xf32> to vector<1x32xf32>
    %52 = vector.shape_cast %51 : vector<1x32xf32> to vector<1x1x32xf32>
    %53 = vector.broadcast %52 : vector<1x1x32xf32> to vector<1x16x32xf32>
    %54 = arith.mulf %50, %53 : vector<1x16x32xf32>
    %55 = arith.addf %49, %54 : vector<1x16x32xf32>
    %c0_29 = arith.constant 0 : index
    %c0_30 = arith.constant 0 : index
    %56 = vector.load %arg5[%c0_29, %c0_30] : memref<1x32xf32, #tpu.memory_space<vmem>>, vector<1x32xf32>
    %57 = vector.shape_cast %56 : vector<1x32xf32> to vector<1x1x32xf32>
    %58 = vector.broadcast %57 : vector<1x1x32xf32> to vector<1x16x32xf32>
    %59 = arith.addf %55, %58 : vector<1x16x32xf32>
    %c0_31 = arith.constant 0 : index
    %c0_32 = arith.constant 0 : index
    %c0_33 = arith.constant 0 : index
    %60 = vector.load %arg6[%c0_31, %c0_32, %c0_33] : memref<1x16x32xf32, #tpu.memory_space<vmem>>, vector<1x16x32xf32>
    tpu.vector_store %arg6[%c0_31, %c0_32, %c0_33], %59 {strides = array<i32>} : memref<1x16x32xf32, #tpu.memory_space<vmem>>, vector<1x16x32xf32>,
    return
  }
  func.func @transform_0(%arg0: i32) -> (i32, i32, i32) {
    %c0_i32 = arith.constant 0 : i32
    %c0_i32_0 = arith.constant 0 : i32
    %c0_i32_1 = arith.constant 0 : i32
    return %arg0, %c0_i32, %c0_i32_0 : i32, i32, i32
  }
  func.func @transform_1(%arg0: i32) -> (i32, i32) {
    %c0_i32 = arith.constant 0 : i32
    %c0_i32_0 = arith.constant 0 : i32
    %c0_i32_1 = arith.constant 0 : i32
    return %c0_i32, %c0_i32_0 : i32, i32
  }
  func.func @transform_2(%arg0: i32) -> (i32, i32) {
    %c0_i32 = arith.constant 0 : i32
    %c0_i32_0 = arith.constant 0 : i32
    %c0_i32_1 = arith.constant 0 : i32
    return %c0_i32, %c0_i32_0 : i32, i32
  }
  func.func @transform_3(%arg0: i32) -> (i32, i32) {
    %c0_i32 = arith.constant 0 : i32
    %c0_i32_0 = arith.constant 0 : i32
    %c0_i32_1 = arith.constant 0 : i32
    return %c0_i32, %c0_i32_0 : i32, i32
  }
  func.func @transform_4(%arg0: i32) -> (i32, i32) {
    %c0_i32 = arith.constant 0 : i32
    %c0_i32_0 = arith.constant 0 : i32
    %c0_i32_1 = arith.constant 0 : i32
    return %c0_i32, %c0_i32_0 : i32, i32
  }
  func.func @transform_5(%arg0: i32) -> (i32, i32, i32) {
    %c0_i32 = arith.constant 0 : i32
    %c0_i32_0 = arith.constant 0 : i32
    %c0_i32_1 = arith.constant 0 : i32
    return %arg0, %c0_i32, %c0_i32_0 : i32, i32, i32
  }
}

</mosaic_0001>

<llo_original>
// kernel: tpu_custom_call.1
$region0: #{tpu_custom_call.1}
  #allocation0 [shape = 'u32[]', space=smem, size = 0x4, offset = 0x4, fixed_abs, tag = 'smem constant byte address 0x4 - core index']
  #allocation1 [shape = 'u32[144,128]{1,0:T(1,128)}', space=vmem, size = 0x12000, scoped, tag = 'internal scratch']
  #allocation2 [shape = 'f32[1,19,32]{2,1,0:T(8,128)}', space=vmem, size = 0x3000, scoped, tag = 'scratch operand']
  %s0 = inlined_call_operand.hbm [shape: f32[2,16,32], index: 0, kind: input, shape index: {}]
  %s1 = inlined_call_operand.vmem [shape: f32[1,32], index: 1, kind: input, shape index: {}]
  %s2 = inlined_call_operand.vmem [shape: f32[1,32], index: 2, kind: input, shape index: {}]
  %s3 = inlined_call_operand.vmem [shape: f32[4,32], index: 3, kind: input, shape index: {}]
  %s4 = inlined_call_operand.vmem [shape: f32[1,32], index: 4, kind: input, shape index: {}]
  %s5 = inlined_call_operand.hbm [shape: f32[2,16,32], index: 5, kind: output, shape index: {}]
  %s6 = sld [smem:[#allocation0]]
  $region57: #{tpu_custom_call.1} parent=0
    _
  %s8 = ssub.s32 1, %s6
  %s9 = scalar_select 0, %s8, %s6
  $region1: #{tpu_custom_call.1} parent=0
    #allocation3 [shape = 'u8[16384]{0}', space=vmem, size = 0x4000, scoped, tag = 'input window, operand 0']
    #allocation4 [shape = 's32[2]{0}', space=sflag, size = 0x8, scoped, tag = 'scoped memory for tpu_custom_call.1']
    #allocation5 [shape = 's32[2]{0}', space=sflag, size = 0x8, scoped, tag = 'scoped memory for tpu_custom_call.1']
    #allocation6 [shape = 'u8[16384]{0}', space=vmem, size = 0x4000, scoped, tag = 'output window, operand 0']
    %10 = vsyncpa [#allocation4], 0
    %s11 = scalar_lea.sflag [#allocation4], 1
    %12 = vsyncpa %s11, 0
    %13 = vsyncpa [#allocation5], 0
    %s14 = scalar_lea.sflag [#allocation5], 1
    %15 = vsyncpa %s14, 0
    loop: start=0, step=1, limit=4
    $region2: #{tpu_custom_call.1} parent=1 // loop_pre_header
      _
    $region3: #{tpu_custom_call.1} parent=1 // loop_header
      %s17 = sphi 0, %s21
      %p18 = scmp.ge.s32.totalorder %s17, 4
      %s27 = sphi 0, %s29
      %s30 = sphi 0, %s27
      %s31 = sphi 0, %s30
      %s47 = sphi 0, %s31
      %s51 = sphi 0, %s51
      %s53 = sphi 0, %s51
      %s54 = sphi 0, %s53
      %s68 = sphi 0, %s54
      %s72 = sphi 0, %s72
      %s74 = sphi 0, %s72
      %s75 = sphi 0, %s74
      %s89 = sphi 0, %s75
      %s93 = sphi 0, %s93
      %s95 = sphi 0, %s93
      %s96 = sphi 0, %s95
      %s110 = sphi 0, %s96
      %s114 = sphi 0, %s114
      %s116 = sphi 0, %s114
      %s117 = sphi 0, %s116
      %s131 = sphi 0, %s117
      %s137 = sphi 0, %s139
      %s140 = sphi 0, %s137
      %s141 = sphi 0, %s140
      %s157 = sphi 0, %s141
    $region4: #{tpu_custom_call.1} parent=1 // loop_header_branch
      %20 = sbr.rel (%p18) target = $region8
    $region5: #{tpu_custom_call.1} parent=1 // loop_body
      %s22 = ssub.s32 %s17, 1
      %s23 = ssub.s32 %s17, 2
      %s24 = sadd.s32 %s17, 1
      %s25 = ssub.s32 %s17, %s24
      %p26 = scmp.eq.s32.totalorder %s25, 0
      %s28 = sadd.s32 %s27, 1
      %s29 = scalar_select %p26, %s27, %s28
      %p32 = pneg %p26
      %p33 = scmp.eq.s32.totalorder %s17, 1
      %p34 = por %p32, %p33
      %p35 = scmp.ne.s32.totalorder %s27, %s30
      %p36 = scmp.eq.s32.totalorder %s17, 0
      %p37 = por %p35, %p36
      %p38 = scmp.ne.s32.totalorder %s27, %s30
      %p39 = scmp.eq.s32.totalorder %s22, 1
      %p40 = por %p38, %p39
      %p41 = scmp.ne.s32.totalorder %s30, %s31
      %p42 = scmp.eq.s32.totalorder %s22, 0
      %p43 = por %p41, %p42
      %p44 = scmp.ne.s32.totalorder %s30, %s31
      %p45 = scmp.eq.s32.totalorder %s23, 1
      %p46 = por %p44, %p45
      %p48 = scmp.ne.s32.totalorder %s31, %s47
      %p49 = scmp.eq.s32.totalorder %s23, 0
      %p50 = por %p48, %p49
      %s52 = sadd.s32 %s51, 1
      %p55 = scmp.eq.s32.totalorder %s17, 1
      %p56 = scmp.ne.s32.totalorder %s51, %s53
      %p57 = scmp.eq.s32.totalorder %s17, 0
      %p58 = por %p56, %p57
      %p59 = scmp.ne.s32.totalorder %s51, %s53
      %p60 = scmp.eq.s32.totalorder %s22, 1
      %p61 = por %p59, %p60
      %p62 = scmp.ne.s32.totalorder %s53, %s54
      %p63 = scmp.eq.s32.totalorder %s22, 0
      %p64 = por %p62, %p63
      %p65 = scmp.ne.s32.totalorder %s53, %s54
      %p66 = scmp.eq.s32.totalorder %s23, 1
      %p67 = por %p65, %p66
      %p69 = scmp.ne.s32.totalorder %s54, %s68
      %p70 = scmp.eq.s32.totalorder %s23, 0
      %p71 = por %p69, %p70
      %s73 = sadd.s32 %s72, 1
      %p76 = scmp.eq.s32.totalorder %s17, 1
      %p77 = scmp.ne.s32.totalorder %s72, %s74
      %p78 = scmp.eq.s32.totalorder %s17, 0
      %p79 = por %p77, %p78
      %p80 = scmp.ne.s32.totalorder %s72, %s74
      %p81 = scmp.eq.s32.totalorder %s22, 1
      %p82 = por %p80, %p81
      %p83 = scmp.ne.s32.totalorder %s74, %s75
      %p84 = scmp.eq.s32.totalorder %s22, 0
      %p85 = por %p83, %p84
      %p86 = scmp.ne.s32.totalorder %s74, %s75
      %p87 = scmp.eq.s32.totalorder %s23, 1
      %p88 = por %p86, %p87
      %p90 = scmp.ne.s32.totalorder %s75, %s89
      %p91 = scmp.eq.s32.totalorder %s23, 0
      %p92 = por %p90, %p91
      %s94 = sadd.s32 %s93, 1
      %p97 = scmp.eq.s32.totalorder %s17, 1
      %p98 = scmp.ne.s32.totalorder %s93, %s95
      %p99 = scmp.eq.s32.totalorder %s17, 0
      %p100 = por %p98, %p99
      %p101 = scmp.ne.s32.totalorder %s93, %s95
      %p102 = scmp.eq.s32.totalorder %s22, 1
      %p103 = por %p101, %p102
      %p104 = scmp.ne.s32.totalorder %s95, %s96
      %p105 = scmp.eq.s32.totalorder %s22, 0
      %p106 = por %p104, %p105
      %p107 = scmp.ne.s32.totalorder %s95, %s96
      %p108 = scmp.eq.s32.totalorder %s23, 1
      %p109 = por %p107, %p108
      %p111 = scmp.ne.s32.totalorder %s96, %s110
      %p112 = scmp.eq.s32.totalorder %s23, 0
      %p113 = por %p111, %p112
      %s115 = sadd.s32 %s114, 1
      %p118 = scmp.eq.s32.totalorder %s17, 1
      %p119 = scmp.ne.s32.totalorder %s114, %s116
      %p120 = scmp.eq.s32.totalorder %s17, 0
      %p121 = por %p119, %p120
      %p122 = scmp.ne.s32.totalorder %s114, %s116
      %p123 = scmp.eq.s32.totalorder %s22, 1
      %p124 = por %p122, %p123
      %p125 = scmp.ne.s32.totalorder %s116, %s117
      %p126 = scmp.eq.s32.totalorder %s22, 0
      %p127 = por %p125, %p126
      %p128 = scmp.ne.s32.totalorder %s116, %s117
      %p129 = scmp.eq.s32.totalorder %s23, 1
      %p130 = por %p128, %p129
      %p132 = scmp.ne.s32.totalorder %s117, %s131
      %p133 = scmp.eq.s32.totalorder %s23, 0
      %p134 = por %p132, %p133
      %s135 = ssub.s32 %s17, %s24
      %p136 = scmp.eq.s32.totalorder %s135, 0
      %s138 = sadd.s32 %s137, 1
      %s139 = scalar_select %p136, %s137, %s138
      %p142 = pneg %p136
      %p143 = scmp.eq.s32.totalorder %s17, 1
      %p144 = por %p142, %p143
      %p145 = scmp.ne.s32.totalorder %s137, %s140
      %p146 = scmp.eq.s32.totalorder %s17, 0
      %p147 = por %p145, %p146
      %p148 = scmp.ne.s32.totalorder %s137, %s140
      %p149 = scmp.eq.s32.totalorder %s22, 1
      %p150 = por %p148, %p149
      %p151 = scmp.ne.s32.totalorder %s140, %s141
      %p152 = scmp.eq.s32.totalorder %s22, 0
      %p153 = por %p151, %p152
      %p154 = scmp.ne.s32.totalorder %s140, %s141
      %p155 = scmp.eq.s32.totalorder %s23, 1
      %p156 = por %p154, %p155
      %p158 = scmp.ne.s32.totalorder %s141, %s157
      %p159 = scmp.eq.s32.totalorder %s23, 0
      %p160 = por %p158, %p159
      %p161 = scmp.le.s32.totalorder 1, %s17
      %p162 = scmp.lt.s32.totalorder %s17, 3
      %p163 = pnand %p161, %p162
      %p164 = pneg %p163
      // Predicated region
      $region9: #{tpu_custom_call.1} parent=5 // pred_check
        _
      $region10: #{tpu_custom_call.1} parent=5 // pred_check_branch
        %166 = sbr.rel (%p163) target = $region12
      $region11: #{tpu_custom_call.1} parent=5 // pred_region
        %s167 = ssub.s32 %s17, 1
        // Predicated region
        $region13: #{tpu_custom_call.1} parent=11 // pred_check
          %p168 = pneg %p64
        $region14: #{tpu_custom_call.1} parent=11 // pred_check_branch
          %170 = sbr.rel (%p168) target = $region16
        $region15: #{tpu_custom_call.1} parent=11 // pred_region
          _
        $region16: #{tpu_custom_call.1} parent=11 // pred_fallthru
          _
        // Predicated region
        $region17: #{tpu_custom_call.1} parent=11 // pred_check
          %p171 = pneg %p85
        $region18: #{tpu_custom_call.1} parent=11 // pred_check_branch
          %173 = sbr.rel (%p171) target = $region20
        $region19: #{tpu_custom_call.1} parent=11 // pred_region
          _
        $region20: #{tpu_custom_call.1} parent=11 // pred_fallthru
          _
        // Predicated region
        $region21: #{tpu_custom_call.1} parent=11 // pred_check
          %p174 = pneg %p106
        $region22: #{tpu_custom_call.1} parent=11 // pred_check_branch
          %176 = sbr.rel (%p174) target = $region24
        $region23: #{tpu_custom_call.1} parent=11 // pred_region
          _
        $region24: #{tpu_custom_call.1} parent=11 // pred_fallthru
          _
        // Predicated region
        $region25: #{tpu_custom_call.1} parent=11 // pred_check
          %p177 = pneg %p127
        $region26: #{tpu_custom_call.1} parent=11 // pred_check_branch
          %179 = sbr.rel (%p177) target = $region28
        $region27: #{tpu_custom_call.1} parent=11 // pred_region
          _
        $region28: #{tpu_custom_call.1} parent=11 // pred_fallthru
          _
      $region12: #{tpu_custom_call.1} parent=5 // pred_fallthru
        _
      %p180 = scmp.lt.s32.totalorder %s17, 2
      // Predicated region
      $region29: #{tpu_custom_call.1} parent=5 // pred_check
        %p181 = pneg %p180
      $region30: #{tpu_custom_call.1} parent=5 // pred_check_branch
        %183 = sbr.rel (%p181) target = $region32
      $region31: #{tpu_custom_call.1} parent=5 // pred_region
        // Predicated region
        $region33: #{tpu_custom_call.1} parent=31 // pred_check
          %p184 = pneg %p37
        $region34: #{tpu_custom_call.1} parent=31 // pred_check_branch
          %186 = sbr.rel (%p184) target = $region36
        $region35: #{tpu_custom_call.1} parent=31 // pred_region
          %s187 = sand.u32 %s27, 1
          %s188 = scalar_lea.sflag [#allocation4], %s187
          %s189 = sand.u32 %s27, 1
          %s190 = smul.addr %s189, 16
          %s191 = scalar_lea.vmem [#allocation3], %s190
          %s193 = ssub.s32 256, 256
          %194 = vsyncadd %s188, %s193
          %s195 = smul.addr %s17, 2
          %s196 = smul.addr %s195, 128
          %s197 = scalar_lea.hbm %s0, %s196
          %s198 = sshll.u32 %s191, 4
          %s199 = int_to_ptr.vmem [resolvable:$true] %s198
          %204 = dma.hbm_to_vmem [thread:$0]  %s197, 256, %s199, %s188, 128, 128, 8
        $region36: #{tpu_custom_call.1} parent=31 // pred_fallthru
          _
      $region32: #{tpu_custom_call.1} parent=5 // pred_fallthru
        _
      %p205 = scmp.le.s32.totalorder 1, %s17
      %p206 = scmp.lt.s32.totalorder %s17, 3
      %p207 = pnand %p205, %p206
      %p208 = pneg %p207
      // Predicated region
      $region37: #{tpu_custom_call.1} parent=5 // pred_check
        _
      $region38: #{tpu_custom_call.1} parent=5 // pred_check_branch
        %210 = sbr.rel (%p207) target = $region40
      $region39: #{tpu_custom_call.1} parent=5 // pred_region
        %s211 = ssub.s32 %s17, 1
        %s212 = sand.u32 %s30, 1
        %s213 = scalar_lea.sflag [#allocation4], %s212
        %s214 = sand.u32 %s30, 1
        %s215 = smul.addr %s214, 16
        %s216 = scalar_lea.vmem [#allocation3], %s215
        // Predicated region
        $region41: #{tpu_custom_call.1} parent=39 // pred_check
          %p217 = pneg %p43
        $region42: #{tpu_custom_call.1} parent=39 // pred_check_branch
          %219 = sbr.rel (%p217) target = $region44
        $region43: #{tpu_custom_call.1} parent=39 // pred_region
          %220 = dma.done %s213, 256
        $region44: #{tpu_custom_call.1} parent=39 // pred_fallthru
          _
        %s221 = sand.u32 %s30, 1
        %s222 = scalar_lea.sflag [#allocation4], %s221
        %s223 = sand.u32 %s30, 1
        %s224 = smul.addr %s223, 16
        %s225 = scalar_lea.vmem [#allocation3], %s224
        %p226 = pneg %p43
        %p227 = pneg %p40
        %p228 = pneg %p64
        %p229 = pneg %p61
        %p230 = pneg %p85
        %p231 = pneg %p82
        %p232 = pneg %p106
        %p233 = pneg %p103
        %p234 = pneg %p127
        %p235 = pneg %p124
        %p236 = pneg %p153
        %p237 = pneg %p150
        %s238 = sand.u32 %s140, 1
        %s239 = scalar_lea.sflag [#allocation5], %s238
        %s240 = sand.u32 %s140, 1
        %s241 = smul.addr %s240, 16
        %s242 = scalar_lea.vmem [#allocation6], %s241
        %v243 = vld [vmem:[%s216] sm:$0xff]
        %v244 = vld [vmem:[%s216 + $0x8] sm:$0xff]
        %vm245 = vcmask 261120
        %v246 = vsel %vm245, %v243, 0.0
        %247 = vadd.xlane.f32.xlu0 %v246
        %v248 = vpop.xlane.xlu0 %247
        %v249 = vsel %vm245, %v244, 0.0
        %250 = vadd.xlane.f32.xlu0 %v249
        %v251 = vpop.xlane.xlu0 %250
        %v252 = vrcp.pop 32.0
        %v253 = vmul.f32 %v248, %v252
        %v254 = vmul.f32 %v251, %v252
        %v255 = vsub.f32 %v243, %v253
        %v256 = vsub.f32 %v244, %v254
        %v257 = vmul.f32 %v255, %v255
        %v258 = vmul.f32 %v256, %v256
        %v259 = vsel %vm245, %v257, 0.0
        %260 = vadd.xlane.f32.xlu0 %v259
        %v261 = vpop.xlane.xlu0 %260
        %v262 = vsel %vm245, %v258, 0.0
        %263 = vadd.xlane.f32.xlu0 %v262
        %v264 = vpop.xlane.xlu0 %263
        %v265 = vmul.f32 %v261, %v252
        %v266 = vmul.f32 %v264, %v252
        %v267 = vadd.f32 %v265, 1e-05
        %v268 = vadd.f32 %v266, 1e-05
        %v269 = vrsqrt.pop %v267
        %v270 = vrsqrt.pop %v268
        %v271 = vmul.f32 %v255, %v269
        %v272 = vmul.f32 %v256, %v270
        %v273 = vld [vmem:[%s1] sm:$0x1]
        %v275 = vlaneseq
        %v276 = vshrl.u32 %v275, 7
        %v277 = vsub.s32 0, %v276
        %v278 = vrot.slane %v273, %v277
        %v280 = vmul.f32 %v271, %v278
        %v281 = vmul.f32 %v272, %v278
        %v282 = vld [vmem:[%s2] sm:$0x1]
        %v284 = vlaneseq
        %v285 = vshrl.u32 %v284, 7
        %v286 = vsub.s32 0, %v285
        %v287 = vrot.slane %v282, %v286
        %v289 = vadd.f32 %v280, %v287
        %v290 = vadd.f32 %v281, %v287
        %291 = vst.msk [vmem:[#allocation2] sm:$0xff] %vm245, 0.0
        %292 = vst.msk [vmem:[#allocation2 + $0x8] sm:$0xff] %vm245, 0.0
        %vm293 = vcmask 256000
        %294 = vst.msk [vmem:[#allocation2 + $0x10] sm:$0x7] %vm293, 0.0
        %295 = vst.msk [vmem:[#allocation2 + $0x3] sm:$0xff] %vm245, %v289
        %296 = vst.msk [vmem:[#allocation2 + $0xb] sm:$0xff] %vm245, %v290
        %v297 = vld [vmem:[%s3] sm:$0xf]
        %v298 = vld [vmem:[#allocation2] sm:$0xff]
        %v299 = vld [vmem:[#allocation2 + $0x8] sm:$0xff]
        %v300 = vlaneseq
        %v301 = vshrl.u32 %v300, 7
        %v302 = vsub.s32 0, %v301
        %v303 = vrot.slane %v297, %v302
        %v304 = vmul.f32 %v298, %v303
        %v305 = vmul.f32 %v299, %v303
        %v306 = vadd.f32 %v304, 0.0
        %v307 = vadd.f32 %v305, 0.0
        %v308 = vld [vmem:[#allocation2 + $0x1] sm:$0xff]
        %v309 = vld [vmem:[#allocation2 + $0x9] sm:$0xff]
        %v310 = vlaneseq
        %v311 = vshrl.u32 %v310, 7
        %v312 = vsub.s32 1, %v311
        %v313 = vrot.slane %v297, %v312
        %v314 = vmul.f32 %v308, %v313
        %v315 = vmul.f32 %v309, %v313
        %v316 = vadd.f32 %v306, %v314
        %v317 = vadd.f32 %v307, %v315
        %v318 = vld [vmem:[#allocation2 + $0x2] sm:$0xff]
        %v319 = vld [vmem:[#allocation2 + $0xa] sm:$0xff]
        %v320 = vlaneseq
        %v321 = vshrl.u32 %v320, 7
        %v322 = vsub.s32 2, %v321
        %v323 = vrot.slane %v297, %v322
        %v324 = vmul.f32 %v318, %v323
        %v325 = vmul.f32 %v319, %v323
        %v326 = vadd.f32 %v316, %v324
        %v327 = vadd.f32 %v317, %v325
        %v328 = vld [vmem:[#allocation2 + $0x3] sm:$0xff]
        %v329 = vld [vmem:[#allocation2 + $0xb] sm:$0xff]
        %v330 = vlaneseq
        %v331 = vshrl.u32 %v330, 7
        %v332 = vsub.s32 3, %v331
        %v333 = vrot.slane %v297, %v332
        %v334 = vmul.f32 %v328, %v333
        %v335 = vmul.f32 %v329, %v333
        %v336 = vadd.f32 %v326, %v334
        %v337 = vadd.f32 %v327, %v335
        %v338 = vld [vmem:[%s4] sm:$0x1]
        %v340 = vlaneseq
        %v341 = vshrl.u32 %v340, 7
        %v342 = vsub.s32 0, %v341
        %v343 = vrot.slane %v338, %v342
        %v345 = vadd.f32 %v336, %v343
        %v346 = vadd.f32 %v337, %v343
        %347 = vst.msk [vmem:[%s242] sm:$0xff] %vm245, %v345
        %348 = vst.msk [vmem:[%s242 + $0x8] sm:$0xff] %vm245, %v346
        %s349 = sand.u32 %s140, 1
        %s350 = scalar_lea.sflag [#allocation5], %s349
        %s351 = sand.u32 %s140, 1
        %s352 = smul.addr %s351, 16
        %s353 = scalar_lea.vmem [#allocation6], %s352
        // Predicated region
        $region45: #{tpu_custom_call.1} parent=39 // pred_check
          %p354 = pneg %p150
        $region46: #{tpu_custom_call.1} parent=39 // pred_check_branch
          %356 = sbr.rel (%p354) target = $region48
        $region47: #{tpu_custom_call.1} parent=39 // pred_region
          %s358 = ssub.s32 256, 256
          %359 = vsyncadd %s350, %s358
          %s360 = smul.addr %s22, 2
          %s361 = smul.addr %s360, 128
          %s362 = scalar_lea.hbm %s5, %s361
          %s363 = sshll.u32 %s353, 4
          %s364 = int_to_ptr.vmem [resolvable:$true] %s363
          %369 = dma.vmem_to_hbm [thread:$0]  %s364, 256, %s362, %s350, 128, 128, 8
        $region48: #{tpu_custom_call.1} parent=39 // pred_fallthru
          _
      $region40: #{tpu_custom_call.1} parent=5 // pred_fallthru
        _
      %p370 = scmp.le.s32.totalorder 2, %s17
      // Predicated region
      $region49: #{tpu_custom_call.1} parent=5 // pred_check
        %p371 = pneg %p370
      $region50: #{tpu_custom_call.1} parent=5 // pred_check_branch
        %373 = sbr.rel (%p371) target = $region52
      $region51: #{tpu_custom_call.1} parent=5 // pred_region
        %s374 = ssub.s32 %s17, 2
        // Predicated region
        $region53: #{tpu_custom_call.1} parent=51 // pred_check
          %p375 = pneg %p156
        $region54: #{tpu_custom_call.1} parent=51 // pred_check_branch
          %377 = sbr.rel (%p375) target = $region56
        $region55: #{tpu_custom_call.1} parent=51 // pred_region
          %s378 = sand.u32 %s141, 1
          %s379 = scalar_lea.sflag [#allocation5], %s378
          %s380 = sand.u32 %s141, 1
          %s381 = smul.addr %s380, 16
          %s382 = scalar_lea.vmem [#allocation6], %s381
          %383 = dma.done %s379, 256
        $region56: #{tpu_custom_call.1} parent=51 // pred_fallthru
          _
      $region52: #{tpu_custom_call.1} parent=5 // pred_fallthru
        _
    $region6: #{tpu_custom_call.1} parent=1 // loop_footer
      %s21 = sadd.s32 1, %s17
    $region7: #{tpu_custom_call.1} parent=1 // loop_footer_branch
      %16 = sbr.rel target = $region3
    $region8: #{tpu_custom_call.1} parent=1 // loop_exit
      _
    %384 = vsyncpa [#allocation4], 1
    %s385 = scalar_lea.sflag [#allocation4], 1
    %386 = vsyncpa %s385, 1
    %387 = vsyncpa [#allocation5], 1
    %s388 = scalar_lea.sflag [#allocation5], 1
    %389 = vsyncpa %s388, 1

</llo_original>
